<compile_context>
chip_gen: v6e
topology: v6e:2x2x1
jax: 0.10.0
libtpu: 0.0.40
codegen_flags: <defaults>
</compile_context>

<pallas_src>
import functools
import math

import jax
import jax.numpy as jnp
import numpy as np
from jax.experimental import pallas as pl
from jax.experimental.pallas import tpu as pltpu


def _round_up(x: int, m: int) -> int:
    return ((x + m - 1) // m) * m


# ---- float32 fused-sincos constants (Cephes-style) --------------------------
_TWO_OVER_PI = 0.6366197723675814
# pi/2 = A + B + C; A and B have few mantissa bits so k*A and k*B are exact for
# the quadrant counts used here (k <= ~233 for max_len = 367).
_PIO2_A = 1.5703125                      # 201 * 2^-7   (exact)
_PIO2_B = 4.837512969970703125e-04       # 2029 * 2^-22 (exact)
_PIO2_C = 7.54978995489188216e-08
# minimax polynomials on |r| <= pi/4
_S1, _S2, _S3 = -1.6666654611e-1, 8.3321608736e-3, -1.9515295891e-4
_C1, _C2, _C3 = 4.166664568298827e-2, -1.388731625493765e-3, 2.443315711809948e-5


def _pe_kernel(pos_ref, seldiv_ref, out_ref, *, max_len: int, fold: int):
    """pos_ref: (TILE, fold) int32; seldiv_ref: (fold, W) f32; out_ref: (TILE, W) f32.

    seldiv[k, j] = div_term[(j % d_model)//2] if j // d_model == k else 0, so
      angle[r, j] = clamp(pos)[r, j // d_model] * div_term[(j % d_model)//2]
    with exactly one f32 rounding (the other terms are exact 0.0).
    """
    pos = jnp.clip(pos_ref[...], 0, max_len - 1).astype(jnp.float32)   # (TILE, fold)

    angle = pos[:, 0:1] * seldiv_ref[0:1, :]                           # (TILE, W)
    for k in range(1, fold):
        angle = angle + pos[:, k:k + 1] * seldiv_ref[k:k + 1, :]

    # ---- fused sincos: shared Cody-Waite range reduction, quadrant select ----
    kq = jnp.floor(angle * _TWO_OVER_PI + 0.5)          # nearest multiple of pi/2
    r = angle - kq * _PIO2_A
    r = r - kq * _PIO2_B
    r = r - kq * _PIO2_C                                 # |r| <= ~pi/4
    r2 = r * r
    sin_r = r + r * r2 * (_S1 + r2 * (_S2 + r2 * _S3))
    cos_r = 1.0 + r2 * (-0.5 + r2 * (_C1 + r2 * (_C2 + r2 * _C3)))

    lane = jax.lax.broadcasted_iota(jnp.int32, angle.shape, 1)
    # even lanes -> sin(angle); odd lanes -> cos(angle) = sin(angle + pi/2),
    # applied as an exact integer +1 on the quadrant index.
    quad = (kq.astype(jnp.int32) + (lane & 1)) & 3
    val = jnp.where((quad & 1) == 1, cos_r, sin_r)
    out_ref[...] = jnp.where((quad & 2) == 2, -val, val)


def _choose_fold(d_model: int, max_width: int = 4096) -> int:
    """Smallest fold with (fold * d_model) % 128 == 0, i.e. lane-dense stores."""
    fold = 128 // math.gcd(d_model, 128)
    if fold * d_model > max_width:
        return 1   # fallback (masked partial-lane stores, still correct)
    return fold


def sinusoidal_positional_encoding(positions: jax.Array,
                                   d_model: int,
                                   max_len: int = 366 + 1,
                                   max_tile_rows: int = 4096) -> jax.Array:
    """positions: integer array of any shape -> f32 array positions.shape + (d_model,)."""
    if d_model % 2 != 0:
        raise ValueError("d_model must be even")

    orig_shape = positions.shape
    pos_flat = positions.reshape(-1).astype(jnp.int32)
    n = pos_flat.shape[0]
    if n == 0:                                            # degenerate-input guard
        return jnp.zeros((*orig_shape, d_model), jnp.float32)

    fold = _choose_fold(d_model)
    width = fold * d_model
    rows = pl.cdiv(n, fold)                               # unpadded folded-row count

    # ---- tile selection ------------------------------------------------------
    # VMEM budget per output block (x2 buffers) + the lane-padded positions
    # block, which occupies tile x 128 lanes regardless of `fold`.
    bytes_per_out_row = width * 4
    vmem_rows = max(8, ((4 * 1024 * 1024) // bytes_per_out_row) // 8 * 8)
    tile = min(_round_up(rows, 8), _round_up(max_tile_rows, 8), vmem_rows)
    if rows > 8:
        # Ensure >= 2 grid steps so the ("parallel",) axis can shard across
        # TensorCores (v7x megacore) once there is enough work.
        tile = min(tile, max(8, _round_up(pl.cdiv(rows, 2), 8)))
    grid = (pl.cdiv(rows, tile),)

    pos2d = jnp.pad(pos_flat, (0, rows * fold - n)).reshape(rows, fold)

    # div_term exactly as in the PyTorch __init__, repeated pairwise so lane j
    # uses div_term[(j % d_model)//2], placed block-diagonally per folded slot.
    half = jnp.exp(jnp.arange(0, d_model, 2, dtype=jnp.float32)
                   * (-math.log(10000.0) / d_model))                   # (d_model//2,)
    div_row = jnp.repeat(half, 2).reshape(1, d_model)                  # (1, d_model)
    seldiv = jnp.kron(jnp.eye(fold, dtype=jnp.float32), div_row)       # (fold, width)

    cost = pl.CostEstimate(
        flops=rows * width * (2 * fold + 20),
        transcendentals=rows * width,                     # 1 sincos-equivalent / element
        bytes_accessed=rows * width * 4 + rows * fold * 4 + fold * width * 4,
    )

    out = pl.pallas_call(
        functools.partial(_pe_kernel, max_len=max_len, fold=fold),
        out_shape=jax.ShapeDtypeStruct((rows, width), jnp.float32),
        grid=grid,
        in_specs=[
            pl.BlockSpec((tile, fold), lambda i: (i, 0)),
            pl.BlockSpec((fold, width), lambda i: (0, 0)),
        ],
        out_specs=pl.BlockSpec((tile, width), lambda i: (i, 0)),
        compiler_params=pltpu.CompilerParams(
            dimension_semantics=("parallel",),
            vmem_limit_bytes=32 * 1024 * 1024,
        ),
        cost_estimate=cost,
    )(pos2d, seldiv)

    # Row-major unfold: (rows, fold*d_model) -> (rows*fold, d_model); the
    # trailing trim (an extra XLA copy) only happens when n % fold != 0.
    flat = out.reshape(rows * fold, d_model)
    if rows * fold != n:
        flat = flat[:n]
    return flat.reshape(*orig_shape, d_model)


if __name__ == "__main__":
    d_model = 32
    max_len = 366 + 1
    batch, seq = 2, 8

    key = jax.random.PRNGKey(0)
    # day-of-year style positions, include out-of-range values to exercise the clamp
    positions = jax.random.randint(key, (batch, seq), minval=-5, maxval=max_len + 10,
                                   dtype=jnp.int32)

    out = sinusoidal_positional_encoding(positions, d_model, max_len)
    out = jax.block_until_ready(out)

    # Reference mirroring the PyTorch table build + gather.  The f32 angles
    # (clamp(pos) * div_term) use the SAME f32 div_term bits as the kernel, so
    # the comparison isolates the kernel's own sincos error (~3e-7).
    div_term = jnp.exp(jnp.arange(0, d_model, 2, dtype=jnp.float32)
                       * (-math.log(10000.0) / d_model))
    div_np = np.asarray(div_term, dtype=np.float32)
    pos_np = np.clip(np.asarray(positions), 0, max_len - 1).astype(np.float32)
    ang = pos_np[..., None] * div_np                      # float32 product (same rounding)
    ref = np.empty(positions.shape + (d_model,), np.float32)
    ref[..., 0::2] = np.sin(ang.astype(np.float64))
    ref[..., 1::2] = np.cos(ang.astype(np.float64))

    assert out.shape == (batch, seq, d_model)
    err = float(np.max(np.abs(np.asarray(out) - ref)))
    assert err < 1e-5, f"max abs error {err}"
    print("KERNEL_OK")
</pallas_src>

<mosaic_0001>
module attributes {stable_mosaic.version = 11 : i64} {
  func.func @_pe_kernel(%arg0: i32, %arg1: memref<8x4xi32, #tpu.memory_space<vmem>>, %arg2: memref<4x128xf32, #tpu.memory_space<vmem>>, %arg3: memref<8x128xf32, #tpu.memory_space<vmem>>) attributes {dimension_semantics = [#tpu.dimension_semantics<parallel>], iteration_bounds = array<i64: 1>, scalar_prefetch = 0 : i64, scratch_operands = 0 : i64, tpu.core_type = #tpu.core_type<tc>, window_params = [{transform_indices = @transform_0, window_bounds = array<i64: 8, 4>}, {pipeline_mode = #tpu.pipeline_mode<synchronous>, transform_indices = @transform_1, window_bounds = array<i64: 4, 128>}, {transform_indices = @transform_2, window_bounds = array<i64: 8, 128>}]} {
    %c0 = arith.constant 0 : index
    %c0_0 = arith.constant 0 : index
    %0 = vector.load %arg1[%c0, %c0_0] : memref<8x4xi32, #tpu.memory_space<vmem>>, vector<8x4xi32>
    %c0_i32 = arith.constant 0 : i32
    %c366_i32 = arith.constant 366 : i32
    %1 = vector.broadcast %c0_i32 : i32 to vector<8x4xi32>
    %2 = arith.maxsi %1, %0 : vector<8x4xi32>
    %3 = vector.broadcast %c366_i32 : i32 to vector<8x4xi32>
    %4 = arith.minsi %3, %2 : vector<8x4xi32>
    %5 = arith.sitofp %4 : vector<8x4xi32> to vector<8x4xf32>
    %6 = vector.extract_strided_slice %5 {offsets = [0, 0], sizes = [8, 1], strides = [1, 1]} : vector<8x4xf32> to vector<8x1xf32>
    %c0_1 = arith.constant 0 : index
    %c0_2 = arith.constant 0 : index
    %7 = vector.load %arg2[%c0_1, %c0_2] : memref<4x128xf32, #tpu.memory_space<vmem>>, vector<1x128xf32>
    %8 = vector.broadcast %6 : vector<8x1xf32> to vector<8x128xf32>
    %9 = vector.broadcast %7 : vector<1x128xf32> to vector<8x128xf32>
    %10 = arith.mulf %8, %9 : vector<8x128xf32>
    %11 = vector.extract_strided_slice %5 {offsets = [0, 1], sizes = [8, 1], strides = [1, 1]} : vector<8x4xf32> to vector<8x1xf32>
    %c1 = arith.constant 1 : index
    %c0_3 = arith.constant 0 : index
    %12 = vector.load %arg2[%c1, %c0_3] : memref<4x128xf32, #tpu.memory_space<vmem>>, vector<1x128xf32>
    %13 = vector.broadcast %11 : vector<8x1xf32> to vector<8x128xf32>
    %14 = vector.broadcast %12 : vector<1x128xf32> to vector<8x128xf32>
    %15 = arith.mulf %13, %14 : vector<8x128xf32>
    %16 = arith.addf %10, %15 : vector<8x128xf32>
    %17 = vector.extract_strided_slice %5 {offsets = [0, 2], sizes = [8, 1], strides = [1, 1]} : vector<8x4xf32> to vector<8x1xf32>
    %c2 = arith.constant 2 : index
    %c0_4 = arith.constant 0 : index
    %18 = vector.load %arg2[%c2, %c0_4] : memref<4x128xf32, #tpu.memory_space<vmem>>, vector<1x128xf32>
    %19 = vector.broadcast %17 : vector<8x1xf32> to vector<8x128xf32>
    %20 = vector.broadcast %18 : vector<1x128xf32> to vector<8x128xf32>
    %21 = arith.mulf %19, %20 : vector<8x128xf32>
    %22 = arith.addf %16, %21 : vector<8x128xf32>
    %23 = vector.extract_strided_slice %5 {offsets = [0, 3], sizes = [8, 1], strides = [1, 1]} : vector<8x4xf32> to vector<8x1xf32>
    %c3 = arith.constant 3 : index
    %c0_5 = arith.constant 0 : index
    %24 = vector.load %arg2[%c3, %c0_5] : memref<4x128xf32, #tpu.memory_space<vmem>>, vector<1x128xf32>
    %25 = vector.broadcast %23 : vector<8x1xf32> to vector<8x128xf32>
    %26 = vector.broadcast %24 : vector<1x128xf32> to vector<8x128xf32>
    %27 = arith.mulf %25, %26 : vector<8x128xf32>
    %28 = arith.addf %22, %27 : vector<8x128xf32>
    %cst = arith.constant 0.636619746 : f32
    %29 = vector.broadcast %cst : f32 to vector<8x128xf32>
    %30 = arith.mulf %28, %29 : vector<8x128xf32>
    %cst_6 = arith.constant 5.000000e-01 : f32
    %31 = vector.broadcast %cst_6 : f32 to vector<8x128xf32>
    %32 = arith.addf %30, %31 : vector<8x128xf32>
    %33 = math.floor %32 : vector<8x128xf32>
    %cst_7 = arith.constant 1.5703125 : f32
    %34 = vector.broadcast %cst_7 : f32 to vector<8x128xf32>
    %35 = arith.mulf %33, %34 : vector<8x128xf32>
    %36 = arith.subf %28, %35 : vector<8x128xf32>
    %cst_8 = arith.constant 4.83751297E-4 : f32
    %37 = vector.broadcast %cst_8 : f32 to vector<8x128xf32>
    %38 = arith.mulf %33, %37 : vector<8x128xf32>
    %39 = arith.subf %36, %38 : vector<8x128xf32>
    %cst_9 = arith.constant 7.549790e-08 : f32
    %40 = vector.broadcast %cst_9 : f32 to vector<8x128xf32>
    %41 = arith.mulf %33, %40 : vector<8x128xf32>
    %42 = arith.subf %39, %41 : vector<8x128xf32>
    %43 = arith.mulf %42, %42 : vector<8x128xf32>
    %44 = arith.mulf %42, %43 : vector<8x128xf32>
    %cst_10 = arith.constant -1.95152956E-4 : f32
    %45 = vector.broadcast %cst_10 : f32 to vector<8x128xf32>
    %46 = arith.mulf %43, %45 : vector<8x128xf32>
    %cst_11 = arith.constant 0.00833216123 : f32
    %47 = vector.broadcast %cst_11 : f32 to vector<8x128xf32>
    %48 = arith.addf %47, %46 : vector<8x128xf32>
    %49 = arith.mulf %43, %48 : vector<8x128xf32>
    %cst_12 = arith.constant -0.166666552 : f32
    %50 = vector.broadcast %cst_12 : f32 to vector<8x128xf32>
    %51 = arith.addf %50, %49 : vector<8x128xf32>
    %52 = arith.mulf %44, %51 : vector<8x128xf32>
    %53 = arith.addf %42, %52 : vector<8x128xf32>
    %cst_13 = arith.constant 2.44331568E-5 : f32
    %54 = vector.broadcast %cst_13 : f32 to vector<8x128xf32>
    %55 = arith.mulf %43, %54 : vector<8x128xf32>
    %cst_14 = arith.constant -0.00138873165 : f32
    %56 = vector.broadcast %cst_14 : f32 to vector<8x128xf32>
    %57 = arith.addf %56, %55 : vector<8x128xf32>
    %58 = arith.mulf %43, %57 : vector<8x128xf32>
    %cst_15 = arith.constant 0.0416666456 : f32
    %59 = vector.broadcast %cst_15 : f32 to vector<8x128xf32>
    %60 = arith.addf %59, %58 : vector<8x128xf32>
    %61 = arith.mulf %43, %60 : vector<8x128xf32>
    %cst_16 = arith.constant -5.000000e-01 : f32
    %62 = vector.broadcast %cst_16 : f32 to vector<8x128xf32>
    %63 = arith.addf %62, %61 : vector<8x128xf32>
    %64 = arith.mulf %43, %63 : vector<8x128xf32>
    %cst_17 = arith.constant 1.000000e+00 : f32
    %65 = vector.broadcast %cst_17 : f32 to vector<8x128xf32>
    %66 = arith.addf %65, %64 : vector<8x128xf32>
    %67 = tpu.iota {dimensions = array<i32: 1>} : vector<8x128xi32>
    %68 = arith.fptosi %33 : vector<8x128xf32> to vector<8x128xi32>
    %c1_i32 = arith.constant 1 : i32
    %69 = vector.broadcast %c1_i32 : i32 to vector<8x128xi32>
    %70 = arith.andi %67, %69 : vector<8x128xi32>
    %71 = arith.addi %68, %70 : vector<8x128xi32>
    %c3_i32 = arith.constant 3 : i32
    %72 = vector.broadcast %c3_i32 : i32 to vector<8x128xi32>
    %73 = arith.andi %71, %72 : vector<8x128xi32>
    %c1_i32_18 = arith.constant 1 : i32
    %74 = vector.broadcast %c1_i32_18 : i32 to vector<8x128xi32>
    %75 = arith.andi %73, %74 : vector<8x128xi32>
    %c1_i32_19 = arith.constant 1 : i32
    %76 = vector.broadcast %c1_i32_19 : i32 to vector<8x128xi32>
    %77 = arith.cmpi eq, %75, %76 : vector<8x128xi32>
    %78 = arith.select %77, %66, %53 : vector<8x128xi1>, vector<8x128xf32>
    %c2_i32 = arith.constant 2 : i32
    %79 = vector.broadcast %c2_i32 : i32 to vector<8x128xi32>
    %80 = arith.andi %73, %79 : vector<8x128xi32>
    %c2_i32_20 = arith.constant 2 : i32
    %81 = vector.broadcast %c2_i32_20 : i32 to vector<8x128xi32>
    %82 = arith.cmpi eq, %80, %81 : vector<8x128xi32>
    %cst_21 = arith.constant 0.000000e+00 : f32
    %83 = vector.broadcast %cst_21 : f32 to vector<8x128xf32>
    %84 = arith.subf %83, %78 : vector<8x128xf32>
    %85 = arith.select %82, %84, %78 : vector<8x128xi1>, vector<8x128xf32>
    %c0_22 = arith.constant 0 : index
    %c0_23 = arith.constant 0 : index
    %86 = vector.load %arg3[%c0_22, %c0_23] : memref<8x128xf32, #tpu.memory_space<vmem>>, vector<8x128xf32>
    tpu.vector_store %arg3[%c0_22, %c0_23], %85 {strides = array<i32>} : memref<8x128xf32, #tpu.memory_space<vmem>>, vector<8x128xf32>,
    return
  }
  func.func @transform_0(%arg0: i32) -> (i32, i32) {
    %c0_i32 = arith.constant 0 : i32
    %c0_i32_0 = arith.constant 0 : i32
    return %arg0, %c0_i32 : i32, i32
  }
  func.func @transform_1(%arg0: i32) -> (i32, i32) {
    %c0_i32 = arith.constant 0 : i32
    %c0_i32_0 = arith.constant 0 : i32
    %c0_i32_1 = arith.constant 0 : i32
    return %c0_i32, %c0_i32_0 : i32, i32
  }
  func.func @transform_2(%arg0: i32) -> (i32, i32) {
    %c0_i32 = arith.constant 0 : i32
    %c0_i32_0 = arith.constant 0 : i32
    return %arg0, %c0_i32 : i32, i32
  }
}

</mosaic_0001>

<llo_original>
// kernel: tpu_custom_call.1
$region0: #{tpu_custom_call.1}
  #allocation0 [shape = 'u32[]', space=smem, size = 0x4, offset = 0x4, fixed_abs, tag = 'smem constant byte address 0x4 - core index']
  #allocation1 [shape = 'u32[144,128]{1,0:T(1,128)}', space=vmem, size = 0x12000, scoped, tag = 'internal scratch']
  %s0 = inlined_call_operand.hbm [shape: s32[4,4], index: 0, kind: input, shape index: {}]
  %s1 = inlined_call_operand.hbm [shape: f32[4,128], index: 1, kind: input, shape index: {}]
  %s2 = inlined_call_operand.hbm [shape: f32[4,128], index: 2, kind: output, shape index: {}]
  %s3 = sld [smem:[#allocation0]]
  $region26: #{tpu_custom_call.1} parent=0
    _
  %s5 = ssub.s32 1, %s3
  %s6 = scalar_select 0, %s5, %s3
  $region1: #{tpu_custom_call.1} parent=0
    #allocation2 [shape = 'u8[4096]{0}', space=vmem, size = 0x1000, scoped, tag = 'input window, operand 0, single buffered']
    #allocation3 [shape = 's32[1]{0}', space=sflag, size = 0x4, scoped, tag = 'scoped memory for tpu_custom_call.1']
    #allocation4 [shape = 's32[1]{0}', space=sflag, size = 0x4, scoped, tag = 'scoped memory for tpu_custom_call.1']
    #allocation5 [shape = 'u8[2048]{0}', space=vmem, size = 0x800, scoped, tag = 'input window, operand 1, single buffered']
    #allocation6 [shape = 's32[1]{0}', space=sflag, size = 0x4, scoped, tag = 'scoped memory for tpu_custom_call.1']
    #allocation7 [shape = 'u8[4096]{0}', space=vmem, size = 0x1000, scoped, tag = 'output window, operand 0, single buffered']
    %7 = vsyncpa [#allocation3], 0
    %8 = vsyncpa [#allocation6], 0
    %9 = vsyncpa [#allocation4], 0
    // Predicated region
    $region2: #{tpu_custom_call.1} parent=1 // pred_check
      _
    $region3: #{tpu_custom_call.1} parent=1 // pred_check_branch
      %11 = sbr.rel (0) target = $region5
    $region4: #{tpu_custom_call.1} parent=1 // pred_region
      %s13 = ssub.s32 128, 64
      %14 = vsyncadd [#allocation3], %s13
      %s15 = sshll.u32 [#allocation2], 4
      %s16 = int_to_ptr.vmem [resolvable:$true] %s15
      %21 = dma.hbm_to_vmem [thread:$0]  %s0, 64, %s16, [#allocation3], 64, 64, 4
    $region5: #{tpu_custom_call.1} parent=1 // pred_fallthru
      _
    // Predicated region
    $region6: #{tpu_custom_call.1} parent=1 // pred_check
      _
    $region7: #{tpu_custom_call.1} parent=1 // pred_check_branch
      %23 = sbr.rel (0) target = $region9
    $region8: #{tpu_custom_call.1} parent=1 // pred_region
      %s25 = ssub.s32 64, 64
      %26 = vsyncadd [#allocation6], %s25
      %s28 = sshll.u32 [#allocation5], 4
      %s29 = int_to_ptr.vmem [resolvable:$true] %s28
      %31 = dma.hbm_to_vmem [thread:$0]  %s1, 64, %s29, [#allocation6]
    $region9: #{tpu_custom_call.1} parent=1 // pred_fallthru
      _
    // Predicated region
    $region10: #{tpu_custom_call.1} parent=1 // pred_check
      _
    $region11: #{tpu_custom_call.1} parent=1 // pred_check_branch
      %33 = sbr.rel (0) target = $region13
    $region12: #{tpu_custom_call.1} parent=1 // pred_region
      %34 = dma.done [#allocation3], 128
    $region13: #{tpu_custom_call.1} parent=1 // pred_fallthru
      _
    // Predicated region
    $region14: #{tpu_custom_call.1} parent=1 // pred_check
      _
    $region15: #{tpu_custom_call.1} parent=1 // pred_check_branch
      %36 = sbr.rel (0) target = $region17
    $region16: #{tpu_custom_call.1} parent=1 // pred_region
      %37 = dma.done [#allocation6], 64
    $region17: #{tpu_custom_call.1} parent=1 // pred_fallthru
      _
    %v38 = vld [vmem:[#allocation2] sm:$0xff]
    %vm39 = vcmp.gt.s32.totalorder %v38, 0
    %v40 = vsel %vm39, %v38, 0
    %vm41 = vcmp.lt.s32.totalorder %v40, 366
    %v42 = vsel %vm41, %v40, 366
    %v43 = vcvt.s32.f32 %v42
    %v44 = vld [vmem:[#allocation5] sm:$0x1]
    %46 = vset.pattern.permute.xlu0 0
    %47 = vperm.xlu0 %46, %v43
    %v48 = vpop.permute.xlu0 %47
    %v50 = vlaneseq
    %v51 = vshrl.u32 %v50, 7
    %v52 = vsub.s32 0, %v51
    %v53 = vrot.slane %v44, %v52
    %v54 = vmul.f32 %v48, %v53
    %v55 = vld [vmem:[#allocation5 + $0x1] sm:$0x1]
    %56 = vset.pattern.permute.xlu0 1
    %57 = vperm.xlu0 %56, %v43
    %v58 = vpop.permute.xlu0 %57
    %v60 = vlaneseq
    %v61 = vshrl.u32 %v60, 7
    %v62 = vsub.s32 0, %v61
    %v63 = vrot.slane %v55, %v62
    %v64 = vmul.f32 %v58, %v63
    %v65 = vadd.f32 %v54, %v64
    %v66 = vld [vmem:[#allocation5 + $0x2] sm:$0x1]
    %67 = vset.pattern.permute.xlu0 2
    %68 = vperm.xlu0 %67, %v43
    %v69 = vpop.permute.xlu0 %68
    %v71 = vlaneseq
    %v72 = vshrl.u32 %v71, 7
    %v73 = vsub.s32 0, %v72
    %v74 = vrot.slane %v66, %v73
    %v75 = vmul.f32 %v69, %v74
    %v76 = vadd.f32 %v65, %v75
    %v77 = vld [vmem:[#allocation5 + $0x3] sm:$0x1]
    %78 = vset.pattern.permute.xlu0 3
    %79 = vperm.xlu0 %78, %v43
    %v80 = vpop.permute.xlu0 %79
    %v82 = vlaneseq
    %v83 = vshrl.u32 %v82, 7
    %v84 = vsub.s32 0, %v83
    %v85 = vrot.slane %v77, %v84
    %v86 = vmul.f32 %v80, %v85
    %v87 = vadd.f32 %v76, %v86
    %v88 = vmul.f32 %v87, 0.63661975
    %v89 = vadd.f32 %v88, 0.5
    %v90 = vfloor.f32 %v89
    %v91 = vmul.f32 %v90, 1.5703125
    %v92 = vsub.f32 %v87, %v91
    %v93 = vmul.f32 %v90, 0.0004837513
    %v94 = vsub.f32 %v92, %v93
    %v95 = vmul.f32 %v90, 7.54979e-08
    %v96 = vsub.f32 %v94, %v95
    %v97 = vmul.f32 %v96, %v96
    %v98 = vmul.f32 %v96, %v97
    %v99 = vmul.f32 %v97, -0.00019515296
    %v100 = vadd.f32 %v99, 0.008332161
    %v101 = vmul.f32 %v97, %v100
    %v102 = vadd.f32 %v101, -0.16666655
    %v103 = vmul.f32 %v98, %v102
    %v104 = vadd.f32 %v96, %v103
    %v105 = vmul.f32 %v97, 2.4433157e-05
    %v106 = vadd.f32 %v105, -0.0013887316
    %v107 = vmul.f32 %v97, %v106
    %v108 = vadd.f32 %v107, 0.041666646
    %v109 = vmul.f32 %v97, %v108
    %v110 = vadd.f32 %v109, -0.5
    %v111 = vmul.f32 %v97, %v110
    %v112 = vadd.f32 %v111, 1.0
    %v113 = vlaneseq
    %v114 = vand.u32 %v113, 127
    %v115 = vcvt.f32.s32.to.zero.pseudo %v90
    %v116 = vand.u32 %v114, 1
    %v117 = vadd.s32 %v115, %v116
    %v118 = vand.u32 %v117, 3
    %v119 = vand.u32 %v118, 1
    %vm120 = vcmp.eq.s32.totalorder %v119, 1
    %v121 = vsel %vm120, %v112, %v104
    %v122 = vand.u32 %v118, 2
    %vm123 = vcmp.eq.s32.totalorder %v122, 2
    %v124 = vsub.f32 0.0, %v121
    %v125 = vsel %vm123, %v124, %v121
    %126 = vst [vmem:[#allocation7] sm:$0xff] %v125
    // Predicated region
    $region18: #{tpu_custom_call.1} parent=1 // pred_check
      _
    $region19: #{tpu_custom_call.1} parent=1 // pred_check_branch
      %128 = sbr.rel (0) target = $region21
    $region20: #{tpu_custom_call.1} parent=1 // pred_region
      %s130 = ssub.s32 128, 64
      %131 = vsyncadd [#allocation4], %s130
      %s132 = sshll.u32 [#allocation7], 4
      %s133 = int_to_ptr.vmem [resolvable:$true] %s132
      %138 = dma.vmem_to_hbm [thread:$0]  %s133, 64, %s2, [#allocation4], 64, 64, 4
    $region21: #{tpu_custom_call.1} parent=1 // pred_fallthru
      _
    // Predicated region
    $region22: #{tpu_custom_call.1} parent=1 // pred_check
      _
    $region23: #{tpu_custom_call.1} parent=1 // pred_check_branch
      %140 = sbr.rel (0) target = $region25
    $region24: #{tpu_custom_call.1} parent=1 // pred_region
      %141 = dma.done [#allocation4], 128
    $region25: #{tpu_custom_call.1} parent=1 // pred_fallthru
      _
    %142 = vsyncpa [#allocation3], 1
    %143 = vsyncpa [#allocation6], 1
    %144 = vsyncpa [#allocation4], 1

</llo_original>
